<compile_context>
chip_gen: v5e
topology: v5e:2x2
jax: 0.10.0
libtpu: 0.0.40
codegen_flags: <defaults>
</compile_context>

<pallas_src>
import math

import jax
import jax.numpy as jnp
import numpy as np
from jax.experimental import pallas as pl
from jax.experimental.pallas import tpu as pltpu


def _round_up(a: int, b: int) -> int:
    return (a + b - 1) // b * b


# ---------------- Kernel 1: fused Q / K / V / skip projections ----------------
def _proj_kernel(x_ref, w_ref, b_ref, q_ref, k_ref, v_ref, s_ref):
    # x: [TM, C] (native dtype straight to MXU); w: [C, 4C] pre-transposed, resident.
    y = jnp.dot(x_ref[...], w_ref[...], preferred_element_type=jnp.float32)
    y = y + b_ref[...].astype(jnp.float32)
    C = q_ref.shape[-1]
    q_ref[...] = y[:, 0 * C:1 * C].astype(q_ref.dtype)
    k_ref[...] = y[:, 1 * C:2 * C].astype(k_ref.dtype)
    v_ref[...] = y[:, 2 * C:3 * C].astype(v_ref.dtype)
    s_ref[...] = y[:, 3 * C:4 * C].astype(s_ref.dtype)


# ---------------- Kernel 2: dense masked multi-head graph attention -----------
def _make_attention_kernel(heads: int):
    def kernel(q_ref, k_ref, v_ref, s_ref, adj_ref, o_ref):
        C = q_ref.shape[-1]
        d = C // heads
        scale = float(d) ** -0.5
        q = q_ref[...]             # [TM, C]    dst-node tile
        k = k_ref[...]             # [Npad, C]  all source nodes (resident)
        v = v_ref[...]             # [Npad, C]
        mask = adj_ref[...] != 0   # [TM, Npad] adj[dst, src]
        neg = jnp.float32(-1e30)
        head_outs = []
        for h in range(heads):     # static unrolled loop; heads is small
            qh = q[:, h * d:(h + 1) * d]
            kh = k[:, h * d:(h + 1) * d]
            vh = v[:, h * d:(h + 1) * d]
            logits = jax.lax.dot_general(
                qh, kh, (((1,), (1,)), ((), ())),
                preferred_element_type=jnp.float32) * scale            # [TM, Npad]
            logits = jnp.where(mask, logits, neg)
            mx = jnp.max(logits, axis=-1, keepdims=True)
            p = jnp.where(mask, jnp.exp(logits - mx), 0.0)
            denom = jnp.sum(p, axis=-1, keepdims=True)
            # nodes with no incoming edges -> p == 0 everywhere -> zero output (PyG semantics)
            alpha = p / jnp.maximum(denom, jnp.float32(1e-30))
            # TODO(synk): training-mode attention dropout not implemented (eval semantics).
            oh = jnp.dot(alpha.astype(v.dtype), vh,
                         preferred_element_type=jnp.float32)            # [TM, d]
            head_outs.append(oh)
        out = jnp.concatenate(head_outs, axis=-1)                       # [TM, C]
        out = out + s_ref[...].astype(jnp.float32)                      # root / skip connection
        o_ref[...] = out.astype(o_ref.dtype)

    return kernel


def transformer_conv_layer(x, edge_index, w_cat_t, b_cat, heads):
    """x: [N, C] node features; edge_index: [2, E] (row0=src, row1=dst, PyG convention);
    w_cat_t: [C, 4C] = concat(Wq.T, Wk.T, Wv.T, Wskip.T); b_cat: [4C]."""
    N, C = x.shape
    assert C % heads == 0
    itemsize = jnp.dtype(x.dtype).itemsize

    # Node-axis tile: 256-aligned for the 256x256 MXU on big graphs, single 8-aligned
    # tile for small ones. Npad is a multiple of TM so there is no ragged tail tile.
    TM = 256 if N >= 256 else _round_up(N, 8)
    Npad = _round_up(N, TM)

    xp = jnp.pad(x, ((0, Npad - N), (0, 0)))

    # Dense adjacency mask adj[dst, src] = 1, built once in the wrapper (padded
    # rows/cols stay 0, so padded sources are masked and padded dst rows are dropped).
    # TODO(synk): very large graphs need a sparse/gather formulation; the dense
    # [Npad, Npad] mask plus resident K/V is the VMEM-limiting term of this design.
    adj = jnp.zeros((Npad, Npad), dtype=x.dtype)
    adj = adj.at[edge_index[1], edge_index[0]].set(jnp.ones((), dtype=x.dtype))

    grid = (Npad // TM,)

    # --- 1) fused Q/K/V/skip projection (packed weight resident across tiles) ---
    q, k, v, s = pl.pallas_call(
        _proj_kernel,
        out_shape=tuple(jax.ShapeDtypeStruct((Npad, C), x.dtype) for _ in range(4)),
        grid_spec=pl.GridSpec(
            grid=grid,
            in_specs=[
                pl.BlockSpec((TM, C), lambda i: (i, 0)),
                pl.BlockSpec((C, 4 * C), lambda i: (0, 0)),
                pl.BlockSpec((1, 4 * C), lambda i: (0, 0)),
            ],
            out_specs=tuple(pl.BlockSpec((TM, C), lambda i: (i, 0)) for _ in range(4)),
        ),
        compiler_params=pltpu.CompilerParams(dimension_semantics=("parallel",)),
        cost_estimate=pl.CostEstimate(
            flops=2 * Npad * C * 4 * C,
            transcendentals=0,
            bytes_accessed=(Npad * C + C * 4 * C + 4 * C + 4 * Npad * C) * itemsize,
        ),
    )(xp, w_cat_t, b_cat.reshape(1, 4 * C))

    # --- 2) masked multi-head attention over incoming edges + skip ---
    out = pl.pallas_call(
        _make_attention_kernel(heads),
        out_shape=jax.ShapeDtypeStruct((Npad, C), x.dtype),
        grid_spec=pl.GridSpec(
            grid=grid,
            in_specs=[
                pl.BlockSpec((TM, C), lambda i: (i, 0)),      # Q   (dst tile)
                pl.BlockSpec((Npad, C), lambda i: (0, 0)),    # K   (all nodes, resident)
                pl.BlockSpec((Npad, C), lambda i: (0, 0)),    # V   (all nodes, resident)
                pl.BlockSpec((TM, C), lambda i: (i, 0)),      # skip (dst tile)
                pl.BlockSpec((TM, Npad), lambda i: (i, 0)),   # adjacency-mask row block
            ],
            out_specs=pl.BlockSpec((TM, C), lambda i: (i, 0)),
        ),
        compiler_params=pltpu.CompilerParams(dimension_semantics=("parallel",)),
        cost_estimate=pl.CostEstimate(
            flops=4 * Npad * Npad * C,
            transcendentals=Npad * Npad * heads,
            bytes_accessed=(6 * Npad * C + Npad * Npad) * itemsize,
        ),
    )(q, k, v, s, adj)

    return out[:N]


def _reference(x, edge_index, Wq, bq, Wk, bk, Wv, bv, Ws, bs, heads):
    # Pure-JAX edge-based reference mirroring PyG TransformerConv (eval mode).
    N, C = x.shape
    d = C // heads
    scale = 1.0 / math.sqrt(d)
    q = (x @ Wq.T + bq).reshape(N, heads, d)
    k = (x @ Wk.T + bk).reshape(N, heads, d)
    v = (x @ Wv.T + bv).reshape(N, heads, d)
    src, dst = edge_index[0], edge_index[1]
    logits = (q[dst] * k[src]).sum(-1) * scale               # [E, H]
    m = jax.ops.segment_max(logits, dst, num_segments=N)     # [N, H]
    p = jnp.exp(logits - m[dst])
    denom = jax.ops.segment_sum(p, dst, num_segments=N)      # [N, H]
    alpha = p / denom[dst]
    msg = alpha[:, :, None] * v[src]                         # [E, H, d]
    out = jax.ops.segment_sum(msg, dst, num_segments=N).reshape(N, C)
    return out + x @ Ws.T + bs


if __name__ == "__main__":
    num_nodes, in_channels, heads = 16, 32, 4   # out_channels = 32 // 4 = 8

    key = jax.random.PRNGKey(0)
    kx, kq, kk, kv, ks = jax.random.split(key, 5)

    x = jax.random.normal(kx, (num_nodes, in_channels), dtype=jnp.float32)

    def linear_params(k, scale=0.1):
        kw, kb = jax.random.split(k)
        w = scale * jax.random.normal(kw, (in_channels, in_channels), dtype=jnp.float32)
        b = scale * jax.random.normal(kb, (in_channels,), dtype=jnp.float32)
        return w, b

    Wq, bq = linear_params(kq)
    Wk, bk = linear_params(kk)
    Wv, bv = linear_params(kv)
    Ws, bs = linear_params(ks)

    # Deterministic edge list: 3 incoming edges per node, except node 0 (no incoming
    # edges) to exercise the empty-softmax path.
    nodes = np.arange(num_nodes)
    src = np.concatenate([nodes, nodes, nodes])
    dst = np.concatenate([(nodes + 1) % num_nodes,
                          (nodes + 3) % num_nodes,
                          (nodes + 5) % num_nodes])
    keep = dst != 0
    edge_index = jnp.asarray(np.stack([src[keep], dst[keep]]), dtype=jnp.int32)

    # Pre-transpose + pack the four nn.Linear weights once (parameter-load time),
    # not per forward call.
    w_cat_t = jnp.concatenate([Wq.T, Wk.T, Wv.T, Ws.T], axis=1)   # [C, 4C]
    b_cat = jnp.concatenate([bq, bk, bv, bs])                     # [4C]

    out = transformer_conv_layer(x, edge_index, w_cat_t, b_cat, heads)
    out = jax.block_until_ready(out)

    ref = _reference(x, edge_index, Wq, bq, Wk, bk, Wv, bv, Ws, bs, heads)
    assert out.shape == (num_nodes, in_channels)
    assert jnp.allclose(out, ref, atol=1e-4, rtol=1e-4), "mismatch vs reference"

    print("KERNEL_OK")
</pallas_src>

<mosaic_0001>
module attributes {stable_mosaic.version = 11 : i64} {
  func.func @_proj_kernel(%arg0: i32, %arg1: memref<16x32xf32, #tpu.memory_space<vmem>>, %arg2: memref<32x128xf32, #tpu.memory_space<vmem>>, %arg3: memref<1x128xf32, #tpu.memory_space<vmem>>, %arg4: memref<16x32xf32, #tpu.memory_space<vmem>>, %arg5: memref<16x32xf32, #tpu.memory_space<vmem>>, %arg6: memref<16x32xf32, #tpu.memory_space<vmem>>, %arg7: memref<16x32xf32, #tpu.memory_space<vmem>>) attributes {dimension_semantics = [#tpu.dimension_semantics<parallel>], iteration_bounds = array<i64: 1>, scalar_prefetch = 0 : i64, scratch_operands = 0 : i64, tpu.core_type = #tpu.core_type<tc>, window_params = [{transform_indices = @transform_0, window_bounds = array<i64: 16, 32>}, {pipeline_mode = #tpu.pipeline_mode<synchronous>, transform_indices = @transform_1, window_bounds = array<i64: 32, 128>}, {pipeline_mode = #tpu.pipeline_mode<synchronous>, transform_indices = @transform_2, window_bounds = array<i64: 1, 128>}, {transform_indices = @transform_3, window_bounds = array<i64: 16, 32>}, {transform_indices = @transform_4, window_bounds = array<i64: 16, 32>}, {transform_indices = @transform_5, window_bounds = array<i64: 16, 32>}, {transform_indices = @transform_6, window_bounds = array<i64: 16, 32>}]} {
    %c0 = arith.constant 0 : index
    %c0_0 = arith.constant 0 : index
    %0 = vector.load %arg1[%c0, %c0_0] : memref<16x32xf32, #tpu.memory_space<vmem>>, vector<16x32xf32>
    %c0_1 = arith.constant 0 : index
    %c0_2 = arith.constant 0 : index
    %1 = vector.load %arg2[%c0_1, %c0_2] : memref<32x128xf32, #tpu.memory_space<vmem>>, vector<32x128xf32>
    %cst = arith.constant dense<0.000000e+00> : vector<16x128xf32>
    %2 = tpu.matmul %0, %1, %cst {dimension_numbers = #tpu.dot_dimension_numbers<[1], [0], [0], [1], [0, 0, 1, 1], [], []>} : vector<16x32xf32>, vector<32x128xf32>, vector<16x128xf32> -> vector<16x128xf32>
    %c0_3 = arith.constant 0 : index
    %c0_4 = arith.constant 0 : index
    %3 = vector.load %arg3[%c0_3, %c0_4] : memref<1x128xf32, #tpu.memory_space<vmem>>, vector<1x128xf32>
    %4 = vector.broadcast %3 : vector<1x128xf32> to vector<16x128xf32>
    %5 = arith.addf %2, %4 : vector<16x128xf32>
    %6 = vector.extract_strided_slice %5 {offsets = [0, 0], sizes = [16, 32], strides = [1, 1]} : vector<16x128xf32> to vector<16x32xf32>
    %c0_5 = arith.constant 0 : index
    %c0_6 = arith.constant 0 : index
    %7 = vector.load %arg4[%c0_5, %c0_6] : memref<16x32xf32, #tpu.memory_space<vmem>>, vector<16x32xf32>
    tpu.vector_store %arg4[%c0_5, %c0_6], %6 {strides = array<i32>} : memref<16x32xf32, #tpu.memory_space<vmem>>, vector<16x32xf32>,
    %8 = vector.extract_strided_slice %5 {offsets = [0, 32], sizes = [16, 32], strides = [1, 1]} : vector<16x128xf32> to vector<16x32xf32>
    %c0_7 = arith.constant 0 : index
    %c0_8 = arith.constant 0 : index
    %9 = vector.load %arg5[%c0_7, %c0_8] : memref<16x32xf32, #tpu.memory_space<vmem>>, vector<16x32xf32>
    tpu.vector_store %arg5[%c0_7, %c0_8], %8 {strides = array<i32>} : memref<16x32xf32, #tpu.memory_space<vmem>>, vector<16x32xf32>,
    %10 = vector.extract_strided_slice %5 {offsets = [0, 64], sizes = [16, 32], strides = [1, 1]} : vector<16x128xf32> to vector<16x32xf32>
    %c0_9 = arith.constant 0 : index
    %c0_10 = arith.constant 0 : index
    %11 = vector.load %arg6[%c0_9, %c0_10] : memref<16x32xf32, #tpu.memory_space<vmem>>, vector<16x32xf32>
    tpu.vector_store %arg6[%c0_9, %c0_10], %10 {strides = array<i32>} : memref<16x32xf32, #tpu.memory_space<vmem>>, vector<16x32xf32>,
    %12 = vector.extract_strided_slice %5 {offsets = [0, 96], sizes = [16, 32], strides = [1, 1]} : vector<16x128xf32> to vector<16x32xf32>
    %c0_11 = arith.constant 0 : index
    %c0_12 = arith.constant 0 : index
    %13 = vector.load %arg7[%c0_11, %c0_12] : memref<16x32xf32, #tpu.memory_space<vmem>>, vector<16x32xf32>
    tpu.vector_store %arg7[%c0_11, %c0_12], %12 {strides = array<i32>} : memref<16x32xf32, #tpu.memory_space<vmem>>, vector<16x32xf32>,
    return
  }
  func.func @transform_0(%arg0: i32) -> (i32, i32) {
    %c0_i32 = arith.constant 0 : i32
    %c0_i32_0 = arith.constant 0 : i32
    return %arg0, %c0_i32 : i32, i32
  }
  func.func @transform_1(%arg0: i32) -> (i32, i32) {
    %c0_i32 = arith.constant 0 : i32
    %c0_i32_0 = arith.constant 0 : i32
    %c0_i32_1 = arith.constant 0 : i32
    return %c0_i32, %c0_i32_0 : i32, i32
  }
  func.func @transform_2(%arg0: i32) -> (i32, i32) {
    %c0_i32 = arith.constant 0 : i32
    %c0_i32_0 = arith.constant 0 : i32
    %c0_i32_1 = arith.constant 0 : i32
    return %c0_i32, %c0_i32_0 : i32, i32
  }
  func.func @transform_3(%arg0: i32) -> (i32, i32) {
    %c0_i32 = arith.constant 0 : i32
    %c0_i32_0 = arith.constant 0 : i32
    return %arg0, %c0_i32 : i32, i32
  }
  func.func @transform_4(%arg0: i32) -> (i32, i32) {
    %c0_i32 = arith.constant 0 : i32
    %c0_i32_0 = arith.constant 0 : i32
    return %arg0, %c0_i32 : i32, i32
  }
  func.func @transform_5(%arg0: i32) -> (i32, i32) {
    %c0_i32 = arith.constant 0 : i32
    %c0_i32_0 = arith.constant 0 : i32
    return %arg0, %c0_i32 : i32, i32
  }
  func.func @transform_6(%arg0: i32) -> (i32, i32) {
    %c0_i32 = arith.constant 0 : i32
    %c0_i32_0 = arith.constant 0 : i32
    return %arg0, %c0_i32 : i32, i32
  }
}

</mosaic_0001>

<llo_original>
// kernel: tpu_custom_call.1
$region0: #{tpu_custom_call.1}
  #allocation0 [shape = 'u32[]', space=smem, size = 0x4, offset = 0x4, fixed_abs, tag = 'smem constant byte address 0x4 - core index']
  #allocation1 [shape = 'u32[72,128]{1,0:T(1,128)}', space=vmem, size = 0x9000, scoped, tag = 'internal scratch']
  %s0 = inlined_call_operand.hbm [shape: f32[16,32], index: 0, kind: input, shape index: {}]
  %s1 = inlined_call_operand.hbm [shape: f32[32,128], index: 1, kind: input, shape index: {}]
  %s2 = inlined_call_operand.vmem [shape: f32[1,128], index: 2, kind: input, shape index: {}]
  %s3 = inlined_call_operand.hbm [shape: f32[16,32], index: 3, kind: output, shape index: {0}]
  %s4 = inlined_call_operand.hbm [shape: f32[16,32], index: 4, kind: output, shape index: {1}]
  %s5 = inlined_call_operand.hbm [shape: f32[16,32], index: 5, kind: output, shape index: {2}]
  %s6 = inlined_call_operand.hbm [shape: f32[16,32], index: 6, kind: output, shape index: {3}]
  %7 = xla_tuple %s3, %s4, %s5, %s6
  %s8 = sld [smem:[#allocation0]]
  $region54: #{tpu_custom_call.1} parent=0
    _
  %s10 = ssub.s32 1, %s8
  %s11 = scalar_select 0, %s10, %s8
  $region1: #{tpu_custom_call.1} parent=0
    #allocation2 [shape = 'u8[8192]{0}', space=vmem, size = 0x2000, scoped, tag = 'input window, operand 0, single buffered']
    #allocation3 [shape = 's32[1]{0}', space=sflag, size = 0x4, scoped, tag = 'scoped memory for tpu_custom_call.1']
    #allocation4 [shape = 's32[1]{0}', space=sflag, size = 0x4, scoped, tag = 'scoped memory for tpu_custom_call.1']
    #allocation5 [shape = 'u8[16384]{0}', space=vmem, size = 0x4000, scoped, tag = 'input window, operand 1, single buffered']
    #allocation6 [shape = 's32[1]{0}', space=sflag, size = 0x4, scoped, tag = 'scoped memory for tpu_custom_call.1']
    #allocation7 [shape = 'u8[8192]{0}', space=vmem, size = 0x2000, scoped, tag = 'output window, operand 0, single buffered']
    #allocation8 [shape = 'u8[8192]{0}', space=vmem, size = 0x2000, scoped, tag = 'output window, operand 1, single buffered']
    #allocation9 [shape = 's32[1]{0}', space=sflag, size = 0x4, scoped, tag = 'scoped memory for tpu_custom_call.1']
    #allocation10 [shape = 'u8[8192]{0}', space=vmem, size = 0x2000, scoped, tag = 'output window, operand 2, single buffered']
    #allocation11 [shape = 'u8[8192]{0}', space=vmem, size = 0x2000, scoped, tag = 'output window, operand 3, single buffered']
    #allocation12 [shape = 's32[1]{0}', space=sflag, size = 0x4, scoped, tag = 'scoped memory for tpu_custom_call.1']
    %12 = vsyncpa [#allocation3], 0
    %13 = vsyncpa [#allocation6], 0
    %14 = vsyncpa [#allocation4], 0
    %15 = vsyncpa [#allocation9], 0
    %16 = vsyncpa [#allocation12], 0
    // Predicated region
    $region2: #{tpu_custom_call.1} parent=1 // pred_check
      _
    $region3: #{tpu_custom_call.1} parent=1 // pred_check_branch
      %18 = sbr.rel (0) target = $region5
    $region4: #{tpu_custom_call.1} parent=1 // pred_region
      %20 = vsyncadd [#allocation3], 0
      %s21 = sshll.u32 %s0, 4
      %s22 = int_to_ptr.hbm [resolvable:$true] %s21
      %s23 = sshll.u32 [#allocation2], 4
      %s24 = int_to_ptr.vmem [resolvable:$true] %s23
      %29 = dma.hbm_to_vmem [thread:$0]  %s22, 256, %s24, [#allocation3], 128, 128, 8
    $region5: #{tpu_custom_call.1} parent=1 // pred_fallthru
      _
    // Predicated region
    $region6: #{tpu_custom_call.1} parent=1 // pred_check
      _
    $region7: #{tpu_custom_call.1} parent=1 // pred_check_branch
      %31 = sbr.rel (0) target = $region9
    $region8: #{tpu_custom_call.1} parent=1 // pred_region
      %33 = vsyncadd [#allocation6], 0
      %s34 = sshll.u32 %s1, 4
      %s35 = int_to_ptr.hbm [resolvable:$true] %s34
      %s36 = sshll.u32 [#allocation5], 4
      %s37 = int_to_ptr.vmem [resolvable:$true] %s36
      %42 = dma.hbm_to_vmem [thread:$0]  %s35, 512, %s37, [#allocation6], 128, 128, 8
    $region9: #{tpu_custom_call.1} parent=1 // pred_fallthru
      _
    // Predicated region
    $region10: #{tpu_custom_call.1} parent=1 // pred_check
      _
    $region11: #{tpu_custom_call.1} parent=1 // pred_check_branch
      %44 = sbr.rel (0) target = $region13
    $region12: #{tpu_custom_call.1} parent=1 // pred_region
      _
    $region13: #{tpu_custom_call.1} parent=1 // pred_fallthru
      _
    // Predicated region
    $region14: #{tpu_custom_call.1} parent=1 // pred_check
      _
    $region15: #{tpu_custom_call.1} parent=1 // pred_check_branch
      %46 = sbr.rel (0) target = $region17
    $region16: #{tpu_custom_call.1} parent=1 // pred_region
      %48 = dma.done [#allocation3], 256
    $region17: #{tpu_custom_call.1} parent=1 // pred_fallthru
      _
    // Predicated region
    $region18: #{tpu_custom_call.1} parent=1 // pred_check
      _
    $region19: #{tpu_custom_call.1} parent=1 // pred_check_branch
      %50 = sbr.rel (0) target = $region21
    $region20: #{tpu_custom_call.1} parent=1 // pred_region
      %52 = dma.done [#allocation6], 512
    $region21: #{tpu_custom_call.1} parent=1 // pred_fallthru
      _
    %v53 = vld [vmem:[#allocation2] sm:$0xff]
    %v54 = vld [vmem:[#allocation2 + $0x8] sm:$0xff]
    %v55 = vld [vmem:[#allocation5] sm:$0xff]
    %v56 = vld [vmem:[#allocation5 + $0x8] sm:$0xff]
    %v57 = vld [vmem:[#allocation5 + $0x10] sm:$0xff]
    %v58 = vld [vmem:[#allocation5 + $0x18] sm:$0xff]
    %v59 = vld [vmem:[%s2] sm:$0x1]
    %v61 = vperm.slane %v59, 0
    %vm63 = vcmask 261120
    %v65 = vsel %vm63, %v53, 0
    %v68 = vsel %vm63, %v54, 0
    %70 = vmatpush.msra.mxu0 0.0
    %71 = vmatpush.msra.mxu0 0.0
    %72 = vmatpush.msra.mxu0 0.0
    %73 = vmatpush.msra.mxu0 0.0
    %74 = vmatpush.msra.mxu0 0.0
    %75 = vmatpush.msra.mxu0 0.0
    %76 = vmatpush.msra.mxu0 0.0
    %77 = vmatpush.msra.mxu0 0.0
    %78 = vmatpush.msra.mxu0 0.0
    %79 = vmatpush.msra.mxu0 0.0
    %80 = vmatpush.msra.mxu0 0.0
    %81 = vmatpush.msra.mxu0 0.0
    %82 = vmatpush.msra.mxu0 %v58
    %83 = vmatpush.msra.mxu0 %v57
    %84 = vmatpush.msra.mxu0 %v56
    %85 = vmatpush.msra.mxu0 %v55
    %86 = vmatmul.f32.gmra.mxu0 %v65
    %v87 = vpop.f32.mrf.mxu0
    %v88 = vadd.f32 %v61, %v87
    %89 = vmatmul.f32.gmra.mxu0 %v68
    %v90 = vpop.f32.mrf.mxu0
    %v91 = vadd.f32 %v61, %v90
    %92 = vdwg.mxu0
    %93 = vst.msk [vmem:[#allocation7] sm:$0xff] %vm63, %v88
    %94 = vst.msk [vmem:[#allocation7 + $0x8] sm:$0xff] %vm63, %v91
    %97 = vrot.lane.b32.xlu0 %v88, 96
    %v98 = vpop.permute.xlu0 %97
    %99 = vrot.lane.b32.xlu0 %v91, 96
    %v100 = vpop.permute.xlu0 %99
    %103 = vst.msk [vmem:[#allocation8] sm:$0xff] %vm63, %v98
    %104 = vst.msk [vmem:[#allocation8 + $0x8] sm:$0xff] %vm63, %v100
    %105 = vrot.lane.b32.xlu0 %v88, 64
    %v106 = vpop.permute.xlu0 %105
    %107 = vrot.lane.b32.xlu0 %v91, 64
    %v108 = vpop.permute.xlu0 %107
    %111 = vst.msk [vmem:[#allocation10] sm:$0xff] %vm63, %v106
    %112 = vst.msk [vmem:[#allocation10 + $0x8] sm:$0xff] %vm63, %v108
    %113 = vrot.lane.b32.xlu0 %v88, 32
    %v114 = vpop.permute.xlu0 %113
    %115 = vrot.lane.b32.xlu0 %v91, 32
    %v116 = vpop.permute.xlu0 %115
    %119 = vst.msk [vmem:[#allocation11] sm:$0xff] %vm63, %v114
    %120 = vst.msk [vmem:[#allocation11 + $0x8] sm:$0xff] %vm63, %v116
    // Predicated region
    $region22: #{tpu_custom_call.1} parent=1 // pred_check
      _
    $region23: #{tpu_custom_call.1} parent=1 // pred_check_branch
      %122 = sbr.rel (0) target = $region25
    $region24: #{tpu_custom_call.1} parent=1 // pred_region
      %124 = vsyncadd [#allocation4], 0
      %s125 = sshll.u32 [#allocation7], 4
      %s126 = int_to_ptr.vmem [resolvable:$true] %s125
      %s127 = sshll.u32 %s3, 4
      %s128 = int_to_ptr.hbm [resolvable:$true] %s127
      %133 = dma.vmem_to_hbm [thread:$0]  %s126, 256, %s128, [#allocation4], 128, 128, 8
    $region25: #{tpu_custom_call.1} parent=1 // pred_fallthru
      _
    // Predicated region
    $region26: #{tpu_custom_call.1} parent=1 // pred_check
      _
    $region27: #{tpu_custom_call.1} parent=1 // pred_check_branch
      %135 = sbr.rel (0) target = $region29
    $region28: #{tpu_custom_call.1} parent=1 // pred_region
      %137 = vsyncadd [#allocation9], 0
      %s138 = sshll.u32 [#allocation8], 4
      %s139 = int_to_ptr.vmem [resolvable:$true] %s138
      %s140 = sshll.u32 %s4, 4
      %s141 = int_to_ptr.hbm [resolvable:$true] %s140
      %146 = dma.vmem_to_hbm [thread:$0]  %s139, 256, %s141, [#allocation9], 128, 128, 8
    $region29: #{tpu_custom_call.1} parent=1 // pred_fallthru
      _
    // Predicated region
    $region30: #{tpu_custom_call.1} parent=1 // pred_check
      _
    $region31: #{tpu_custom_call.1} parent=1 // pred_check_branch
      %148 = sbr.rel (0) target = $region33
    $region32: #{tpu_custom_call.1} parent=1 // pred_region
      %150 = vsyncadd [#allocation9], 0
      %s151 = sshll.u32 [#allocation10], 4
      %s152 = int_to_ptr.vmem [resolvable:$true] %s151
      %s153 = sshll.u32 %s5, 4
      %s154 = int_to_ptr.hbm [resolvable:$true] %s153
      %159 = dma.vmem_to_hbm [thread:$0]  %s152, 256, %s154, [#allocation9], 128, 128, 8
    $region33: #{tpu_custom_call.1} parent=1 // pred_fallthru
      _
    // Predicated region
    $region34: #{tpu_custom_call.1} parent=1 // pred_check
      _
    $region35: #{tpu_custom_call.1} parent=1 // pred_check_branch
      %161 = sbr.rel (0) target = $region37
    $region36: #{tpu_custom_call.1} parent=1 // pred_region
      %163 = vsyncadd [#allocation12], 0
      %s164 = sshll.u32 [#allocation11], 4
      %s165 = int_to_ptr.vmem [resolvable:$true] %s164
      %s166 = sshll.u32 %s6, 4
      %s167 = int_to_ptr.hbm [resolvable:$true] %s166
      %172 = dma.vmem_to_hbm [thread:$0]  %s165, 256, %s167, [#allocation12], 128, 128, 8
    $region37: #{tpu_custom_call.1} parent=1 // pred_fallthru
      _
    // Predicated region
    $region38: #{tpu_custom_call.1} parent=1 // pred_check
      _
    $region39: #{tpu_custom_call.1} parent=1 // pred_check_branch
      %174 = sbr.rel (0) target = $region41
    $region40: #{tpu_custom_call.1} parent=1 // pred_region
      %176 = dma.done [#allocation4], 256
    $region41: #{tpu_custom_call.1} parent=1 // pred_fallthru
      _
    // Predicated region
    $region42: #{tpu_custom_call.1} parent=1 // pred_check
      _
    $region43: #{tpu_custom_call.1} parent=1 // pred_check_branch
      %178 = sbr.rel (0) target = $region45
    $region44: #{tpu_custom_call.1} parent=1 // pred_region
      %180 = dma.done [#allocation9], 256
    $region45: #{tpu_custom_call.1} parent=1 // pred_fallthru
      _
    // Predicated region
    $region46: #{tpu_custom_call.1} parent=1 // pred_check
      _
    $region47: #{tpu_custom_call.1} parent=1 // pred_check_branch
      %182 = sbr.rel (0) target = $region49
    $region48: #{tpu_custom_call.1} parent=1 // pred_region
      %184 = dma.done [#allocation9], 256
    $region49: #{tpu_custom_call.1} parent=1 // pred_fallthru
      _
    // Predicated region
    $region50: #{tpu_custom_call.1} parent=1 // pred_check
      _
    $region51: #{tpu_custom_call.1} parent=1 // pred_check_branch
      %186 = sbr.rel (0) target = $region53
    $region52: #{tpu_custom_call.1} parent=1 // pred_region
      %188 = dma.done [#allocation12], 256
    $region53: #{tpu_custom_call.1} parent=1 // pred_fallthru
      _
    %189 = vsyncpa [#allocation3], 1
    %190 = vsyncpa [#allocation6], 1
    %191 = vsyncpa [#allocation4], 1
    %192 = vsyncpa [#allocation9], 1
    %193 = vsyncpa [#allocation12], 1

</llo_original>
